<compile_context>
chip_gen: v6e
topology: v6e:2x2x1
jax: 0.10.0
libtpu: 0.0.40
codegen_flags: <defaults>
</compile_context>

<pallas_src>
import functools

import numpy as np
import jax
import jax.numpy as jnp
from jax.experimental import pallas as pl
from jax.experimental.pallas import tpu as pltpu


# ----------------------------------------------------------------------------
# Offline parameter preparation (block-banded conv weights, tiled biases)
# ----------------------------------------------------------------------------
def _band_conv_weights(w_hwio, width):
    """(3,3,cin,cout) HWIO conv weights -> (3, width*cin, width*cout).

    With each image row flattened to a (width*cin)-long vector, a 3x3 'same'
    conv is:  out_row[r] = sum_dh  in_row[r+dh-1] @ band[dh].
    The zero column-padding of the conv is folded into the band structure
    (out-of-range input columns simply have no matrix entries).
    """
    kh, kw, cin, cout = w_hwio.shape
    assert kh == 3 and kw == 3, "kernel is specialized to 3x3 convs"
    w = np.asarray(w_hwio, dtype=np.float32)
    band = np.zeros((kh, width * cin, width * cout), np.float32)
    for dh in range(kh):
        for wo in range(width):
            for dw in range(kw):
                wi = wo + dw - 1                      # input column (pad=1)
                if 0 <= wi < width:
                    band[dh, wi * cin:(wi + 1) * cin,
                         wo * cout:(wo + 1) * cout] = w[dh, dw]
    return band


def prepare_bottleneck_params(params, W, dot_dtype=jnp.bfloat16):
    """Fold BN (already folded into w/b), band the weights for width W and
    cast them to the MXU dtype.  Done once, outside the kernel."""
    w1, b1 = params["w1"], params["b1"]               # (3,3,c1,c_), (1,c_)
    w2, b2 = params["w2"], params["b2"]               # (3,3,c_,c2), (1,c2)
    return {
        "w1b": jnp.asarray(_band_conv_weights(w1, W), dot_dtype),
        "b1r": jnp.tile(b1.astype(jnp.float32), (1, W)),      # (1, W*c_)
        "w2b": jnp.asarray(_band_conv_weights(w2, W), dot_dtype),
        "b2r": jnp.tile(b2.astype(jnp.float32), (1, W)),      # (1, W*c2)
        "c1": int(w1.shape[2]), "c_": int(w1.shape[3]),
        "c2": int(w2.shape[3]), "W": int(W),
    }


def _pick_vmem_limit():
    """Generation-aware VMEM budget: leave headroom for compiler scratch on
    64-MiB v7x (~48 MiB) and use the larger VMEM on 128-MiB v5e/v6e (~96 MiB)."""
    cap = 64 * 1024 * 1024                            # safe fallback
    try:
        info = pltpu.get_tpu_info()
        cap = int(getattr(info, "vmem_capacity_bytes", cap))
    except Exception:
        pass
    return max(32 * 1024 * 1024, min((cap * 3) // 4, 100 * 1024 * 1024))


# ----------------------------------------------------------------------------
# Fused Bottleneck kernel
# ----------------------------------------------------------------------------
def _bottleneck_kernel(x_ref, w1_ref, b1_ref, w2_ref, b2_ref, o_ref,
                       *, th, H, W, c1, c_, c2, add):
    """One (batch n, row-tile i) step.

    x_ref : (H+4, W*c1)      row-flattened input with a 2-row halo each side,
                             resident across the row-tile axis (one DMA/image).
    w1_ref: (3, W*c1, W*c_)  cv1 banded weights (BN scale folded), bf16.
    b1_ref: (1, W*c_)        cv1 folded BN bias, f32.
    w2_ref: (3, W*c_, W*c2)  cv2 banded weights, bf16.
    b2_ref: (1, W*c2)        cv2 folded BN bias, f32.
    o_ref : (th, W*c2)       lane-dense output row tile.
    """
    i = pl.program_id(1)
    A = th + 2                                        # rows of t that cv2 needs

    h0 = pl.multiple_of(i * th, th)
    slab = x_ref[pl.ds(h0, th + 4), :]                # (th+4, W*c1) f32
    slab_bf = slab.astype(jnp.bfloat16)               # bf16 MXU operands

    # ---- cv1: 3x3 conv == 3 row-shifted dense matmuls, f32 accumulate ------
    acc1 = jnp.dot(slab_bf[0:A], w1_ref[0], preferred_element_type=jnp.float32)
    acc1 = acc1 + jnp.dot(slab_bf[1:A + 1], w1_ref[1],
                          preferred_element_type=jnp.float32)
    acc1 = acc1 + jnp.dot(slab_bf[2:A + 2], w1_ref[2],
                          preferred_element_type=jnp.float32)
    t = acc1 + b1_ref[...]
    t = t * jax.nn.sigmoid(t)                         # SiLU (f32 epilogue)

    # Rows of t outside [0, H) are cv2's zero padding (cv1 there would give
    # silu(bias), not 0).  Only rows 0 / A-1 of the first / last tile can be
    # affected, so a tiny (A, 1) mask + one broadcast multiply is enough.
    row = jax.lax.broadcasted_iota(jnp.int32, (A, 1), 0) + (i * th - 1)
    keep = jnp.where((row >= 0) & (row < H), 1.0, 0.0)          # (A, 1) f32
    t = t * keep

    # ---- cv2: same banded-matmul form, + SiLU (+ fused residual) ------------
    t_bf = t.astype(jnp.bfloat16)
    acc2 = jnp.dot(t_bf[0:th], w2_ref[0], preferred_element_type=jnp.float32)
    acc2 = acc2 + jnp.dot(t_bf[1:th + 1], w2_ref[1],
                          preferred_element_type=jnp.float32)
    acc2 = acc2 + jnp.dot(t_bf[2:th + 2], w2_ref[2],
                          preferred_element_type=jnp.float32)
    y = acc2 + b2_ref[...]
    y = y * jax.nn.sigmoid(y)                         # SiLU
    if add:
        y = y + slab[2:2 + th]                        # residual from resident f32 x
    o_ref[...] = y.astype(o_ref.dtype)


# ----------------------------------------------------------------------------
# Wrapper: layout, padding, pallas_call
# ----------------------------------------------------------------------------
def bottleneck_forward(x_nchw, prepared, *, shortcut=True, th=None):
    c1, c_, c2, W = prepared["c1"], prepared["c_"], prepared["c2"], prepared["W"]
    N, C, H, Wx = x_nchw.shape
    assert C == c1 and Wx == W
    add = bool(shortcut and c1 == c2)                 # matches Bottleneck.add

    if th is None:
        th = next((t for t in (64, 32, 16, 8) if t <= H and H % t == 0), H)
    assert H % th == 0 and (th % 8 == 0 or th == H), "bad row tile"

    # NCHW -> NHWC -> row-flattened (N, H, W*c1); then a 2-row halo each side
    # for the two stacked 3x3 convs.  No column halo: the conv's column
    # zero-padding is folded into the banded weight matrices.
    x = jnp.transpose(x_nchw, (0, 2, 3, 1)).reshape(N, H, W * c1)
    xp = jnp.pad(x, ((0, 0), (2, 2), (0, 0)))

    kernel = functools.partial(_bottleneck_kernel, th=th, H=H, W=W,
                               c1=c1, c_=c_, c2=c2, add=add)

    out_flat = pl.pallas_call(
        kernel,
        out_shape=jax.ShapeDtypeStruct((N, H, W * c2), x_nchw.dtype),
        grid=(N, H // th),
        in_specs=[
            # Padded input: block index depends only on n -> DMA'd from HBM
            # exactly once per image, resident across all its row tiles.
            pl.BlockSpec((None, H + 4, W * c1), lambda n, i: (n, 0, 0)),
            pl.BlockSpec((3, W * c1, W * c_), lambda n, i: (0, 0, 0)),  # cv1 W
            pl.BlockSpec((1, W * c_), lambda n, i: (0, 0)),             # cv1 b
            pl.BlockSpec((3, W * c_, W * c2), lambda n, i: (0, 0, 0)),  # cv2 W
            pl.BlockSpec((1, W * c2), lambda n, i: (0, 0)),             # cv2 b
        ],
        out_specs=pl.BlockSpec((None, th, W * c2), lambda n, i: (n, i, 0)),
        compiler_params=pltpu.CompilerParams(
            # Shard only the batch axis across megacore TCs so each core keeps
            # the "x read once per image" property; row tiles stay sequential.
            dimension_semantics=("parallel", "arbitrary"),
            vmem_limit_bytes=_pick_vmem_limit()),
    )(xp, prepared["w1b"], prepared["b1r"], prepared["w2b"], prepared["b2r"])

    out = out_flat.reshape(N, H, W, c2)
    return jnp.transpose(out, (0, 3, 1, 2))           # NHWC -> NCHW


# ----------------------------------------------------------------------------
# Parameter construction (deterministic, synthetic) with BN folded offline
# ----------------------------------------------------------------------------
def _init_conv_bn_folded(key, cin, cout, k):
    kw, kg, kb, km, kv = jax.random.split(key, 5)
    w = 0.1 * jax.random.normal(kw, (k, k, cin, cout), jnp.float32)   # HWIO
    gamma = 1.0 + 0.1 * jax.random.normal(kg, (cout,), jnp.float32)
    beta = 0.1 * jax.random.normal(kb, (cout,), jnp.float32)
    mean = 0.05 * jax.random.normal(km, (cout,), jnp.float32)
    var = jnp.abs(0.5 + 0.1 * jax.random.normal(kv, (cout,), jnp.float32))
    scale = gamma / jnp.sqrt(var + 1e-5)
    w_folded = w * scale[None, None, None, :]         # fold BN scale into weights
    bias = (beta - mean * scale)[None, :]             # (1, cout) folded BN bias
    return w_folded, bias


def init_bottleneck_params(key, c1, c2, e=0.5):
    c_ = int(c2 * e)
    k1, k2 = jax.random.split(key)
    w1, b1 = _init_conv_bn_folded(k1, c1, c_, 3)      # cv1: Conv(c1, c_, 3)
    w2, b2 = _init_conv_bn_folded(k2, c_, c2, 3)      # cv2: Conv(c_, c2, 3)
    return {"w1": w1, "b1": b1, "w2": w2, "b2": b2}


# ----------------------------------------------------------------------------
# Pure-JAX reference (lax.conv, f32) for correctness checking
# ----------------------------------------------------------------------------
def bottleneck_reference(x_nchw, params, shortcut=True):
    def conv_silu(x, w, b):
        y = jax.lax.conv_general_dilated(
            x, w, window_strides=(1, 1), padding="SAME",
            dimension_numbers=("NHWC", "HWIO", "NHWC"))
        y = y + b[0]
        return y * jax.nn.sigmoid(y)

    c1 = params["w1"].shape[2]
    c2 = params["w2"].shape[3]
    x = jnp.transpose(x_nchw, (0, 2, 3, 1))
    t = conv_silu(x, params["w1"], params["b1"])
    y = conv_silu(t, params["w2"], params["b2"])
    if shortcut and c1 == c2:
        y = y + x
    return jnp.transpose(y, (0, 3, 1, 2))


if __name__ == "__main__":
    key = jax.random.PRNGKey(0)
    pkey, xkey = jax.random.split(key)

    # Bottleneck(c1=8, c2=8, shortcut=True, e=0.5) -> c_=4, on a 16x16 input.
    N, C1, C2, H, W = 2, 8, 8, 16, 16
    params = init_bottleneck_params(pkey, C1, C2, e=0.5)
    prepared = prepare_bottleneck_params(params, W)   # banded bf16 weights
    x = jax.random.normal(xkey, (N, C1, H, W), jnp.float32)   # NCHW, like torch

    out = jax.block_until_ready(
        bottleneck_forward(x, prepared, shortcut=True, th=8))
    ref = jax.block_until_ready(bottleneck_reference(x, params, shortcut=True))

    assert out.shape == (N, C2, H, W)
    max_err = float(jnp.max(jnp.abs(out - ref)))
    # Tolerance sized for bf16 MXU operands (f32 accumulate/epilogue) vs the
    # f32 lax.conv reference; still far tighter than any halo/indexing bug.
    assert jnp.allclose(out, ref, atol=4e-2, rtol=4e-2), \
        f"mismatch vs reference (max abs err {max_err})"

    print("KERNEL_OK")
</pallas_src>

<mosaic_0001>
module attributes {stable_mosaic.version = 11 : i64} {
  func.func @_bottleneck_kernel(%arg0: i32, %arg1: i32, %arg2: memref<1x20x128xf32, #tpu.memory_space<vmem>>, %arg3: memref<3x128x64xbf16, #tpu.memory_space<vmem>>, %arg4: memref<1x64xf32, #tpu.memory_space<vmem>>, %arg5: memref<3x64x128xbf16, #tpu.memory_space<vmem>>, %arg6: memref<1x128xf32, #tpu.memory_space<vmem>>, %arg7: memref<1x8x128xf32, #tpu.memory_space<vmem>>) attributes {dimension_semantics = [#tpu.dimension_semantics<parallel>, #tpu.dimension_semantics<arbitrary>], iteration_bounds = array<i64: 2, 2>, scalar_prefetch = 0 : i64, scratch_operands = 0 : i64, tpu.core_type = #tpu.core_type<tc>, window_params = [{transform_indices = @transform_0, window_bounds = array<i64: 1, 20, 128>}, {pipeline_mode = #tpu.pipeline_mode<synchronous>, transform_indices = @transform_1, window_bounds = array<i64: 3, 128, 64>}, {pipeline_mode = #tpu.pipeline_mode<synchronous>, transform_indices = @transform_2, window_bounds = array<i64: 1, 64>}, {pipeline_mode = #tpu.pipeline_mode<synchronous>, transform_indices = @transform_3, window_bounds = array<i64: 3, 64, 128>}, {pipeline_mode = #tpu.pipeline_mode<synchronous>, transform_indices = @transform_4, window_bounds = array<i64: 1, 128>}, {transform_indices = @transform_5, window_bounds = array<i64: 1, 8, 128>}]} {
    %c8_i32 = arith.constant 8 : i32
    %0 = arith.muli %arg1, %c8_i32 : i32
    %1 = tpu.assume_multiple %0, 8 : i32
    %c0 = arith.constant 0 : index
    %2 = arith.index_cast %1 : i32 to index
    %c0_0 = arith.constant 0 : index
    %3 = vector.load %arg2[%c0, %2, %c0_0] : memref<1x20x128xf32, #tpu.memory_space<vmem>>, vector<1x12x128xf32>
    %4 = vector.shape_cast %3 : vector<1x12x128xf32> to vector<12x128xf32>
    %5 = arith.truncf %4 : vector<12x128xf32> to vector<12x128xbf16>
    %6 = vector.extract_strided_slice %5 {offsets = [0, 0], sizes = [10, 128], strides = [1, 1]} : vector<12x128xbf16> to vector<10x128xbf16>
    %c0_1 = arith.constant 0 : index
    %c0_2 = arith.constant 0 : index
    %c0_3 = arith.constant 0 : index
    %7 = vector.load %arg3[%c0_1, %c0_2, %c0_3] : memref<3x128x64xbf16, #tpu.memory_space<vmem>>, vector<1x128x64xbf16>
    %8 = vector.shape_cast %7 : vector<1x128x64xbf16> to vector<128x64xbf16>
    %cst = arith.constant dense<0.000000e+00> : vector<10x64xf32>
    %9 = tpu.matmul %6, %8, %cst {dimension_numbers = #tpu.dot_dimension_numbers<[1], [0], [0], [1], [0, 0, 1, 1], [], []>} : vector<10x128xbf16>, vector<128x64xbf16>, vector<10x64xf32> -> vector<10x64xf32>
    %10 = vector.extract_strided_slice %5 {offsets = [1, 0], sizes = [10, 128], strides = [1, 1]} : vector<12x128xbf16> to vector<10x128xbf16>
    %c1 = arith.constant 1 : index
    %c0_4 = arith.constant 0 : index
    %c0_5 = arith.constant 0 : index
    %11 = vector.load %arg3[%c1, %c0_4, %c0_5] : memref<3x128x64xbf16, #tpu.memory_space<vmem>>, vector<1x128x64xbf16>
    %12 = vector.shape_cast %11 : vector<1x128x64xbf16> to vector<128x64xbf16>
    %cst_6 = arith.constant dense<0.000000e+00> : vector<10x64xf32>
    %13 = tpu.matmul %10, %12, %cst_6 {dimension_numbers = #tpu.dot_dimension_numbers<[1], [0], [0], [1], [0, 0, 1, 1], [], []>} : vector<10x128xbf16>, vector<128x64xbf16>, vector<10x64xf32> -> vector<10x64xf32>
    %14 = arith.addf %9, %13 : vector<10x64xf32>
    %15 = vector.extract_strided_slice %5 {offsets = [2, 0], sizes = [10, 128], strides = [1, 1]} : vector<12x128xbf16> to vector<10x128xbf16>
    %c2 = arith.constant 2 : index
    %c0_7 = arith.constant 0 : index
    %c0_8 = arith.constant 0 : index
    %16 = vector.load %arg3[%c2, %c0_7, %c0_8] : memref<3x128x64xbf16, #tpu.memory_space<vmem>>, vector<1x128x64xbf16>
    %17 = vector.shape_cast %16 : vector<1x128x64xbf16> to vector<128x64xbf16>
    %cst_9 = arith.constant dense<0.000000e+00> : vector<10x64xf32>
    %18 = tpu.matmul %15, %17, %cst_9 {dimension_numbers = #tpu.dot_dimension_numbers<[1], [0], [0], [1], [0, 0, 1, 1], [], []>} : vector<10x128xbf16>, vector<128x64xbf16>, vector<10x64xf32> -> vector<10x64xf32>
    %19 = arith.addf %14, %18 : vector<10x64xf32>
    %c0_10 = arith.constant 0 : index
    %c0_11 = arith.constant 0 : index
    %20 = vector.load %arg4[%c0_10, %c0_11] : memref<1x64xf32, #tpu.memory_space<vmem>>, vector<1x64xf32>
    %21 = vector.broadcast %20 : vector<1x64xf32> to vector<10x64xf32>
    %22 = arith.addf %19, %21 : vector<10x64xf32>
    %23 = arith.negf %22 : vector<10x64xf32>
    %24 = math.exp %23 : vector<10x64xf32>
    %cst_12 = arith.constant 1.000000e+00 : f32
    %25 = vector.broadcast %cst_12 : f32 to vector<10x64xf32>
    %26 = arith.addf %25, %24 : vector<10x64xf32>
    %27 = arith.divf %25, %26 : vector<10x64xf32>
    %28 = arith.mulf %22, %27 : vector<10x64xf32>
    %29 = tpu.iota {dimensions = array<i32: 0>} : vector<10x1xi32>
    %c8_i32_13 = arith.constant 8 : i32
    %30 = arith.muli %arg1, %c8_i32_13 : i32
    %c1_i32 = arith.constant 1 : i32
    %31 = arith.subi %30, %c1_i32 : i32
    %32 = vector.broadcast %31 : i32 to vector<10x1xi32>
    %33 = arith.addi %29, %32 : vector<10x1xi32>
    %c0_i32 = arith.constant 0 : i32
    %34 = vector.broadcast %c0_i32 : i32 to vector<10x1xi32>
    %35 = arith.cmpi sge, %33, %34 : vector<10x1xi32>
    %c16_i32 = arith.constant 16 : i32
    %36 = vector.broadcast %c16_i32 : i32 to vector<10x1xi32>
    %37 = arith.cmpi slt, %33, %36 : vector<10x1xi32>
    %38 = arith.andi %35, %37 : vector<10x1xi1>
    %cst_14 = arith.constant 1.000000e+00 : f32
    %cst_15 = arith.constant 0.000000e+00 : f32
    %39 = vector.broadcast %cst_14 : f32 to vector<10x1xf32>
    %40 = vector.broadcast %cst_15 : f32 to vector<10x1xf32>
    %41 = arith.select %38, %39, %40 : vector<10x1xi1>, vector<10x1xf32>
    %42 = vector.broadcast %41 : vector<10x1xf32> to vector<10x64xf32>
    %43 = arith.mulf %28, %42 : vector<10x64xf32>
    %44 = arith.truncf %43 : vector<10x64xf32> to vector<10x64xbf16>
    %45 = vector.extract_strided_slice %44 {offsets = [0, 0], sizes = [8, 64], strides = [1, 1]} : vector<10x64xbf16> to vector<8x64xbf16>
    %c0_16 = arith.constant 0 : index
    %c0_17 = arith.constant 0 : index
    %c0_18 = arith.constant 0 : index
    %46 = vector.load %arg5[%c0_16, %c0_17, %c0_18] : memref<3x64x128xbf16, #tpu.memory_space<vmem>>, vector<1x64x128xbf16>
    %47 = vector.shape_cast %46 : vector<1x64x128xbf16> to vector<64x128xbf16>
    %cst_19 = arith.constant dense<0.000000e+00> : vector<8x128xf32>
    %48 = tpu.matmul %45, %47, %cst_19 {dimension_numbers = #tpu.dot_dimension_numbers<[1], [0], [0], [1], [0, 0, 1, 1], [], []>} : vector<8x64xbf16>, vector<64x128xbf16>, vector<8x128xf32> -> vector<8x128xf32>
    %49 = vector.extract_strided_slice %44 {offsets = [1, 0], sizes = [8, 64], strides = [1, 1]} : vector<10x64xbf16> to vector<8x64xbf16>
    %c1_20 = arith.constant 1 : index
    %c0_21 = arith.constant 0 : index
    %c0_22 = arith.constant 0 : index
    %50 = vector.load %arg5[%c1_20, %c0_21, %c0_22] : memref<3x64x128xbf16, #tpu.memory_space<vmem>>, vector<1x64x128xbf16>
    %51 = vector.shape_cast %50 : vector<1x64x128xbf16> to vector<64x128xbf16>
    %cst_23 = arith.constant dense<0.000000e+00> : vector<8x128xf32>
    %52 = tpu.matmul %49, %51, %cst_23 {dimension_numbers = #tpu.dot_dimension_numbers<[1], [0], [0], [1], [0, 0, 1, 1], [], []>} : vector<8x64xbf16>, vector<64x128xbf16>, vector<8x128xf32> -> vector<8x128xf32>
    %53 = arith.addf %48, %52 : vector<8x128xf32>
    %54 = vector.extract_strided_slice %44 {offsets = [2, 0], sizes = [8, 64], strides = [1, 1]} : vector<10x64xbf16> to vector<8x64xbf16>
    %c2_24 = arith.constant 2 : index
    %c0_25 = arith.constant 0 : index
    %c0_26 = arith.constant 0 : index
    %55 = vector.load %arg5[%c2_24, %c0_25, %c0_26] : memref<3x64x128xbf16, #tpu.memory_space<vmem>>, vector<1x64x128xbf16>
    %56 = vector.shape_cast %55 : vector<1x64x128xbf16> to vector<64x128xbf16>
    %cst_27 = arith.constant dense<0.000000e+00> : vector<8x128xf32>
    %57 = tpu.matmul %54, %56, %cst_27 {dimension_numbers = #tpu.dot_dimension_numbers<[1], [0], [0], [1], [0, 0, 1, 1], [], []>} : vector<8x64xbf16>, vector<64x128xbf16>, vector<8x128xf32> -> vector<8x128xf32>
    %58 = arith.addf %53, %57 : vector<8x128xf32>
    %c0_28 = arith.constant 0 : index
    %c0_29 = arith.constant 0 : index
    %59 = vector.load %arg6[%c0_28, %c0_29] : memref<1x128xf32, #tpu.memory_space<vmem>>, vector<1x128xf32>
    %60 = vector.broadcast %59 : vector<1x128xf32> to vector<8x128xf32>
    %61 = arith.addf %58, %60 : vector<8x128xf32>
    %62 = arith.negf %61 : vector<8x128xf32>
    %63 = math.exp %62 : vector<8x128xf32>
    %cst_30 = arith.constant 1.000000e+00 : f32
    %64 = vector.broadcast %cst_30 : f32 to vector<8x128xf32>
    %65 = arith.addf %64, %63 : vector<8x128xf32>
    %66 = arith.divf %64, %65 : vector<8x128xf32>
    %67 = arith.mulf %61, %66 : vector<8x128xf32>
    %68 = vector.extract_strided_slice %4 {offsets = [2, 0], sizes = [8, 128], strides = [1, 1]} : vector<12x128xf32> to vector<8x128xf32>
    %69 = arith.addf %67, %68 : vector<8x128xf32>
    %c0_31 = arith.constant 0 : index
    %c0_32 = arith.constant 0 : index
    %c0_33 = arith.constant 0 : index
    %70 = vector.load %arg7[%c0_31, %c0_32, %c0_33] : memref<1x8x128xf32, #tpu.memory_space<vmem>>, vector<1x8x128xf32>
    %71 = vector.shape_cast %70 : vector<1x8x128xf32> to vector<8x128xf32>
    %72 = vector.shape_cast %69 : vector<8x128xf32> to vector<1x8x128xf32>
    tpu.vector_store %arg7[%c0_31, %c0_32, %c0_33], %72 {strides = array<i32>} : memref<1x8x128xf32, #tpu.memory_space<vmem>>, vector<1x8x128xf32>,
    return
  }
  func.func @transform_0(%arg0: i32, %arg1: i32) -> (i32, i32, i32) {
    %c0_i32 = arith.constant 0 : i32
    %c0_i32_0 = arith.constant 0 : i32
    %c0_i32_1 = arith.constant 0 : i32
    return %arg0, %c0_i32, %c0_i32_0 : i32, i32, i32
  }
  func.func @transform_1(%arg0: i32, %arg1: i32) -> (i32, i32, i32) {
    %c0_i32 = arith.constant 0 : i32
    %c0_i32_0 = arith.constant 0 : i32
    %c0_i32_1 = arith.constant 0 : i32
    %c0_i32_2 = arith.constant 0 : i32
    return %c0_i32, %c0_i32_0, %c0_i32_1 : i32, i32, i32
  }
  func.func @transform_2(%arg0: i32, %arg1: i32) -> (i32, i32) {
    %c0_i32 = arith.constant 0 : i32
    %c0_i32_0 = arith.constant 0 : i32
    %c0_i32_1 = arith.constant 0 : i32
    return %c0_i32, %c0_i32_0 : i32, i32
  }
  func.func @transform_3(%arg0: i32, %arg1: i32) -> (i32, i32, i32) {
    %c0_i32 = arith.constant 0 : i32
    %c0_i32_0 = arith.constant 0 : i32
    %c0_i32_1 = arith.constant 0 : i32
    %c0_i32_2 = arith.constant 0 : i32
    return %c0_i32, %c0_i32_0, %c0_i32_1 : i32, i32, i32
  }
  func.func @transform_4(%arg0: i32, %arg1: i32) -> (i32, i32) {
    %c0_i32 = arith.constant 0 : i32
    %c0_i32_0 = arith.constant 0 : i32
    %c0_i32_1 = arith.constant 0 : i32
    return %c0_i32, %c0_i32_0 : i32, i32
  }
  func.func @transform_5(%arg0: i32, %arg1: i32) -> (i32, i32, i32) {
    %c0_i32 = arith.constant 0 : i32
    %c0_i32_0 = arith.constant 0 : i32
    return %arg0, %arg1, %c0_i32 : i32, i32, i32
  }
}

</mosaic_0001>

<llo_original>
// kernel: tpu_custom_call.1
$region0: #{tpu_custom_call.1}
  #allocation0 [shape = 'u32[]', space=smem, size = 0x4, offset = 0x4, fixed_abs, tag = 'smem constant byte address 0x4 - core index']
  #allocation1 [shape = 'u32[144,128]{1,0:T(1,128)}', space=vmem, size = 0x12000, scoped, tag = 'internal scratch']
  %s0 = inlined_call_operand.vmem [shape: f32[2,20,128], index: 0, kind: input, shape index: {}]
  %s1 = inlined_call_operand.vmem [shape: bf16[3,128,64], index: 1, kind: input, shape index: {}]
  %s2 = inlined_call_operand.vmem [shape: f32[1,64], index: 2, kind: input, shape index: {}]
  %s3 = inlined_call_operand.vmem [shape: bf16[3,64,128], index: 3, kind: input, shape index: {}]
  %s4 = inlined_call_operand.vmem [shape: f32[1,128], index: 4, kind: input, shape index: {}]
  %s5 = inlined_call_operand.hbm [shape: f32[2,16,128], index: 5, kind: output, shape index: {}]
  %s6 = sld [smem:[#allocation0]]
  $region53: #{tpu_custom_call.1} parent=0
    _
  %s8 = ssub.s32 1, %s6
  %s9 = scalar_select 0, %s8, %s6
  $region1: #{tpu_custom_call.1} parent=0
    #allocation2 [shape = 'u8[8192]{0}', space=vmem, size = 0x2000, scoped, tag = 'output window, operand 0']
    #allocation3 [shape = 's32[2]{0}', space=sflag, size = 0x8, scoped, tag = 'scoped memory for tpu_custom_call.1']
    %10 = vsyncpa [#allocation3], 0
    %s11 = scalar_lea.sflag [#allocation3], 1
    %12 = vsyncpa %s11, 0
    loop: start=0, step=1, limit=6
    $region2: #{tpu_custom_call.1} parent=1 // loop_pre_header
      _
    $region3: #{tpu_custom_call.1} parent=1 // loop_header
      %s14 = sphi 0, %s18
      %p15 = scmp.ge.s32.totalorder %s14, 6
      %s21 = sphi 0, %s33
      %s22 = sphi 0, %s29
      %s23 = sphi 0, %s21
      %s24 = sphi 0, %s22
      %s25 = sphi 0, %s23
      %s26 = sphi 0, %s24
      %s36 = sphi 0, %s38
      %s39 = sphi 0, %s36
      %s40 = sphi 0, %s39
      %s56 = sphi 0, %s40
      %s60 = sphi 0, %s60
      %s62 = sphi 0, %s60
      %s63 = sphi 0, %s62
      %s77 = sphi 0, %s63
      %s81 = sphi 0, %s81
      %s83 = sphi 0, %s81
      %s84 = sphi 0, %s83
      %s98 = sphi 0, %s84
      %s102 = sphi 0, %s102
      %s104 = sphi 0, %s102
      %s105 = sphi 0, %s104
      %s119 = sphi 0, %s105
      %s123 = sphi 0, %s123
      %s125 = sphi 0, %s123
      %s126 = sphi 0, %s125
      %s140 = sphi 0, %s126
      %s148 = sphi 0, %s150
      %s151 = sphi 0, %s148
      %s152 = sphi 0, %s151
      %s168 = sphi 0, %s152
    $region4: #{tpu_custom_call.1} parent=1 // loop_header_branch
      %17 = sbr.rel (%p15) target = $region8
    $region5: #{tpu_custom_call.1} parent=1 // loop_body
      %s19 = ssub.s32 %s14, 1
      %s20 = ssub.s32 %s14, 2
      %s27 = sadd.s32 1, %s22
      %p28 = scmp.ge.s32.totalorder %s27, 2
      %s29 = scalar_select %p28, 0, %s27
      %s30 = sadd.s32 1, %s21
      %s31 = scalar_select %p28, %s30, %s21
      %p32 = scmp.ge.s32.totalorder %s31, 2
      %s33 = scalar_select %p32, 0, %s31
      %s34 = ssub.s32 %s21, %s33
      %p35 = scmp.eq.s32.totalorder %s34, 0
      %s37 = sadd.s32 %s36, 1
      %s38 = scalar_select %p35, %s36, %s37
      %p41 = pneg %p35
      %p42 = scmp.eq.s32.totalorder %s14, 3
      %p43 = por %p41, %p42
      %p44 = scmp.ne.s32.totalorder %s36, %s39
      %p45 = scmp.eq.s32.totalorder %s14, 0
      %p46 = por %p44, %p45
      %p47 = scmp.ne.s32.totalorder %s36, %s39
      %p48 = scmp.eq.s32.totalorder %s19, 3
      %p49 = por %p47, %p48
      %p50 = scmp.ne.s32.totalorder %s39, %s40
      %p51 = scmp.eq.s32.totalorder %s19, 0
      %p52 = por %p50, %p51
      %p53 = scmp.ne.s32.totalorder %s39, %s40
      %p54 = scmp.eq.s32.totalorder %s20, 3
      %p55 = por %p53, %p54
      %p57 = scmp.ne.s32.totalorder %s40, %s56
      %p58 = scmp.eq.s32.totalorder %s20, 0
      %p59 = por %p57, %p58
      %s61 = sadd.s32 %s60, 1
      %p64 = scmp.eq.s32.totalorder %s14, 3
      %p65 = scmp.ne.s32.totalorder %s60, %s62
      %p66 = scmp.eq.s32.totalorder %s14, 0
      %p67 = por %p65, %p66
      %p68 = scmp.ne.s32.totalorder %s60, %s62
      %p69 = scmp.eq.s32.totalorder %s19, 3
      %p70 = por %p68, %p69
      %p71 = scmp.ne.s32.totalorder %s62, %s63
      %p72 = scmp.eq.s32.totalorder %s19, 0
      %p73 = por %p71, %p72
      %p74 = scmp.ne.s32.totalorder %s62, %s63
      %p75 = scmp.eq.s32.totalorder %s20, 3
      %p76 = por %p74, %p75
      %p78 = scmp.ne.s32.totalorder %s63, %s77
      %p79 = scmp.eq.s32.totalorder %s20, 0
      %p80 = por %p78, %p79
      %s82 = sadd.s32 %s81, 1
      %p85 = scmp.eq.s32.totalorder %s14, 3
      %p86 = scmp.ne.s32.totalorder %s81, %s83
      %p87 = scmp.eq.s32.totalorder %s14, 0
      %p88 = por %p86, %p87
      %p89 = scmp.ne.s32.totalorder %s81, %s83
      %p90 = scmp.eq.s32.totalorder %s19, 3
      %p91 = por %p89, %p90
      %p92 = scmp.ne.s32.totalorder %s83, %s84
      %p93 = scmp.eq.s32.totalorder %s19, 0
      %p94 = por %p92, %p93
      %p95 = scmp.ne.s32.totalorder %s83, %s84
      %p96 = scmp.eq.s32.totalorder %s20, 3
      %p97 = por %p95, %p96
      %p99 = scmp.ne.s32.totalorder %s84, %s98
      %p100 = scmp.eq.s32.totalorder %s20, 0
      %p101 = por %p99, %p100
      %s103 = sadd.s32 %s102, 1
      %p106 = scmp.eq.s32.totalorder %s14, 3
      %p107 = scmp.ne.s32.totalorder %s102, %s104
      %p108 = scmp.eq.s32.totalorder %s14, 0
      %p109 = por %p107, %p108
      %p110 = scmp.ne.s32.totalorder %s102, %s104
      %p111 = scmp.eq.s32.totalorder %s19, 3
      %p112 = por %p110, %p111
      %p113 = scmp.ne.s32.totalorder %s104, %s105
      %p114 = scmp.eq.s32.totalorder %s19, 0
      %p115 = por %p113, %p114
      %p116 = scmp.ne.s32.totalorder %s104, %s105
      %p117 = scmp.eq.s32.totalorder %s20, 3
      %p118 = por %p116, %p117
      %p120 = scmp.ne.s32.totalorder %s105, %s119
      %p121 = scmp.eq.s32.totalorder %s20, 0
      %p122 = por %p120, %p121
      %s124 = sadd.s32 %s123, 1
      %p127 = scmp.eq.s32.totalorder %s14, 3
      %p128 = scmp.ne.s32.totalorder %s123, %s125
      %p129 = scmp.eq.s32.totalorder %s14, 0
      %p130 = por %p128, %p129
      %p131 = scmp.ne.s32.totalorder %s123, %s125
      %p132 = scmp.eq.s32.totalorder %s19, 3
      %p133 = por %p131, %p132
      %p134 = scmp.ne.s32.totalorder %s125, %s126
      %p135 = scmp.eq.s32.totalorder %s19, 0
      %p136 = por %p134, %p135
      %p137 = scmp.ne.s32.totalorder %s125, %s126
      %p138 = scmp.eq.s32.totalorder %s20, 3
      %p139 = por %p137, %p138
      %p141 = scmp.ne.s32.totalorder %s126, %s140
      %p142 = scmp.eq.s32.totalorder %s20, 0
      %p143 = por %p141, %p142
      %s144 = ssub.s32 %s21, %s33
      %s145 = ssub.s32 %s22, %s29
      %s146 = sor.u32 %s144, %s145
      %p147 = scmp.eq.s32.totalorder %s146, 0
      %s149 = sadd.s32 %s148, 1
      %s150 = scalar_select %p147, %s148, %s149
      %p153 = pneg %p147
      %p154 = scmp.eq.s32.totalorder %s14, 3
      %p155 = por %p153, %p154
      %p156 = scmp.ne.s32.totalorder %s148, %s151
      %p157 = scmp.eq.s32.totalorder %s14, 0
      %p158 = por %p156, %p157
      %p159 = scmp.ne.s32.totalorder %s148, %s151
      %p160 = scmp.eq.s32.totalorder %s19, 3
      %p161 = por %p159, %p160
      %p162 = scmp.ne.s32.totalorder %s151, %s152
      %p163 = scmp.eq.s32.totalorder %s19, 0
      %p164 = por %p162, %p163
      %p165 = scmp.ne.s32.totalorder %s151, %s152
      %p166 = scmp.eq.s32.totalorder %s20, 3
      %p167 = por %p165, %p166
      %p169 = scmp.ne.s32.totalorder %s152, %s168
      %p170 = scmp.eq.s32.totalorder %s20, 0
      %p171 = por %p169, %p170
      %p172 = scmp.le.s32.totalorder 1, %s14
      %p173 = scmp.lt.s32.totalorder %s14, 5
      %p174 = pnand %p172, %p173
      %p175 = pneg %p174
      // Predicated region
      $region9: #{tpu_custom_call.1} parent=5 // pred_check
        _
      $region10: #{tpu_custom_call.1} parent=5 // pred_check_branch
        %177 = sbr.rel (%p174) target = $region12
      $region11: #{tpu_custom_call.1} parent=5 // pred_region
        %s178 = ssub.s32 %s14, 1
        // Predicated region
        $region13: #{tpu_custom_call.1} parent=11 // pred_check
          %p179 = pneg %p73
        $region14: #{tpu_custom_call.1} parent=11 // pred_check_branch
          %181 = sbr.rel (%p179) target = $region16
        $region15: #{tpu_custom_call.1} parent=11 // pred_region
          _
        $region16: #{tpu_custom_call.1} parent=11 // pred_fallthru
          _
        // Predicated region
        $region17: #{tpu_custom_call.1} parent=11 // pred_check
          %p182 = pneg %p94
        $region18: #{tpu_custom_call.1} parent=11 // pred_check_branch
          %184 = sbr.rel (%p182) target = $region20
        $region19: #{tpu_custom_call.1} parent=11 // pred_region
          _
        $region20: #{tpu_custom_call.1} parent=11 // pred_fallthru
          _
        // Predicated region
        $region21: #{tpu_custom_call.1} parent=11 // pred_check
          %p185 = pneg %p115
        $region22: #{tpu_custom_call.1} parent=11 // pred_check_branch
          %187 = sbr.rel (%p185) target = $region24
        $region23: #{tpu_custom_call.1} parent=11 // pred_region
          _
        $region24: #{tpu_custom_call.1} parent=11 // pred_fallthru
          _
        // Predicated region
        $region25: #{tpu_custom_call.1} parent=11 // pred_check
          %p188 = pneg %p136
        $region26: #{tpu_custom_call.1} parent=11 // pred_check_branch
          %190 = sbr.rel (%p188) target = $region28
        $region27: #{tpu_custom_call.1} parent=11 // pred_region
          _
        $region28: #{tpu_custom_call.1} parent=11 // pred_fallthru
          _
      $region12: #{tpu_custom_call.1} parent=5 // pred_fallthru
        _
      %p191 = scmp.lt.s32.totalorder %s14, 4
      // Predicated region
      $region29: #{tpu_custom_call.1} parent=5 // pred_check
        %p192 = pneg %p191
      $region30: #{tpu_custom_call.1} parent=5 // pred_check_branch
        %194 = sbr.rel (%p192) target = $region32
      $region31: #{tpu_custom_call.1} parent=5 // pred_region
        // Predicated region
        $region33: #{tpu_custom_call.1} parent=31 // pred_check
          %p195 = pneg %p46
        $region34: #{tpu_custom_call.1} parent=31 // pred_check_branch
          %197 = sbr.rel (%p195) target = $region36
        $region35: #{tpu_custom_call.1} parent=31 // pred_region
          %p198 = scmp.lt.s32.totalorder %s21, 1
          %s199 = scalar_select %p198, %s21, 1
          %s200 = smul.addr %s199, 3
          %s201 = smul.addr %s200, 8
          %s202 = scalar_lea.vmem %s0, %s201
        $region36: #{tpu_custom_call.1} parent=31 // pred_fallthru
          _
      $region32: #{tpu_custom_call.1} parent=5 // pred_fallthru
        _
      %p203 = scmp.le.s32.totalorder 1, %s14
      %p204 = scmp.lt.s32.totalorder %s14, 5
      %p205 = pnand %p203, %p204
      %p206 = pneg %p205
      // Predicated region
      $region37: #{tpu_custom_call.1} parent=5 // pred_check
        _
      $region38: #{tpu_custom_call.1} parent=5 // pred_check_branch
        %208 = sbr.rel (%p205) target = $region40
      $region39: #{tpu_custom_call.1} parent=5 // pred_region
        %s209 = ssub.s32 %s14, 1
        %p210 = scmp.lt.s32.totalorder %s23, 1
        %s211 = scalar_select %p210, %s23, 1
        %s212 = smul.addr %s211, 3
        %s213 = smul.addr %s212, 8
        %s214 = scalar_lea.vmem %s0, %s213
        %p215 = pneg %p52
        %p216 = pneg %p49
        %p217 = pneg %p73
        %p218 = pneg %p70
        %p219 = pneg %p94
        %p220 = pneg %p91
        %p221 = pneg %p115
        %p222 = pneg %p112
        %p223 = pneg %p136
        %p224 = pneg %p133
        %p225 = pneg %p164
        %p226 = pneg %p161
        %s227 = sand.u32 %s151, 1
        %s228 = scalar_lea.sflag [#allocation3], %s227
        %s229 = sand.u32 %s151, 1
        %s230 = smul.addr %s229, 8
        %s231 = scalar_lea.vmem [#allocation2], %s230
        %p232 = scmp.lt.s32.totalorder %s23, 1
        %s233 = scalar_select %p232, %s23, 1
        %s234 = smul.addr %s233, 3
        %s235 = smul.addr %s234, 8
        %s236 = scalar_lea.vmem %s0, %s235
        %s238 = smul.u32 %s24, 8
        %s239 = scalar_lea.vmem %s236, %s238
        %v240 = vld [vmem:[%s239] sm:$0xff]
        %v241 = vld [vmem:[%s239 + $0x8] sm:$0xf]
        %v242 = vpack.c.bf16 %v241, %v240
        %v243 = vld [vmem:[%s1] sm:$0xf]
        %v244 = vld [vmem:[%s1 + $0x4] sm:$0xf]
        %v245 = vld [vmem:[%s1 + $0x8] sm:$0xf]
        %v246 = vld [vmem:[%s1 + $0xc] sm:$0xf]
        %v247 = vld [vmem:[%s1 + $0x10] sm:$0xf]
        %v248 = vld [vmem:[%s1 + $0x14] sm:$0xf]
        %v249 = vld [vmem:[%s1 + $0x18] sm:$0xf]
        %v250 = vld [vmem:[%s1 + $0x1c] sm:$0xf]
        %v251 = vld [vmem:[%s1 + $0x20] sm:$0xf]
        %v252 = vld [vmem:[%s1 + $0x24] sm:$0xf]
        %v253 = vld [vmem:[%s1 + $0x28] sm:$0xf]
        %v254 = vld [vmem:[%s1 + $0x2c] sm:$0xf]
        %v255 = vld [vmem:[%s1 + $0x30] sm:$0xf]
        %v256 = vld [vmem:[%s1 + $0x34] sm:$0xf]
        %v257 = vld [vmem:[%s1 + $0x38] sm:$0xf]
        %v258 = vld [vmem:[%s1 + $0x3c] sm:$0xf]
        %s259 = scalar_lea.vmem %s1, 64
        %v260 = vld [vmem:[%s259] sm:$0xf]
        %v261 = vld [vmem:[%s259 + $0x4] sm:$0xf]
        %v262 = vld [vmem:[%s259 + $0x8] sm:$0xf]
        %v263 = vld [vmem:[%s259 + $0xc] sm:$0xf]
        %v264 = vld [vmem:[%s259 + $0x10] sm:$0xf]
        %v265 = vld [vmem:[%s259 + $0x14] sm:$0xf]
        %v266 = vld [vmem:[%s259 + $0x18] sm:$0xf]
        %v267 = vld [vmem:[%s259 + $0x1c] sm:$0xf]
        %v268 = vld [vmem:[%s259 + $0x20] sm:$0xf]
        %v269 = vld [vmem:[%s259 + $0x24] sm:$0xf]
        %v270 = vld [vmem:[%s259 + $0x28] sm:$0xf]
        %v271 = vld [vmem:[%s259 + $0x2c] sm:$0xf]
        %v272 = vld [vmem:[%s259 + $0x30] sm:$0xf]
        %v273 = vld [vmem:[%s259 + $0x34] sm:$0xf]
        %v274 = vld [vmem:[%s259 + $0x38] sm:$0xf]
        %v275 = vld [vmem:[%s259 + $0x3c] sm:$0xf]
        %v277 = vshrl.u32 %v242, 16
        %v279 = vshll.u32 %v242, 16
        %v281 = vrot.slane %v279, 1
        %v282 = vor.u32 %v277, %v281
        %v300 = vunpack.c.l.b16 %v260
        %v301 = vunpack.c.l.b16 %v261
        %v302 = vunpack.c.l.b16 %v262
        %v303 = vunpack.c.l.b16 %v263
        %v304 = vunpack.c.l.b16 %v264
        %v305 = vunpack.c.l.b16 %v265
        %v306 = vunpack.c.l.b16 %v266
        %v307 = vunpack.c.l.b16 %v267
        %v308 = vunpack.c.l.b16 %v268
        %v309 = vunpack.c.l.b16 %v269
        %v310 = vunpack.c.l.b16 %v270
        %v311 = vunpack.c.l.b16 %v271
        %v312 = vunpack.c.l.b16 %v272
        %v313 = vunpack.c.l.b16 %v273
        %v314 = vunpack.c.l.b16 %v274
        %v315 = vunpack.c.l.b16 %v275
        %v316 = vpack.c.b16 %v301, %v300
        %v317 = vpack.c.b16 %v303, %v302
        %v318 = vpack.c.b16 %v305, %v304
        %v319 = vpack.c.b16 %v307, %v306
        %v320 = vpack.c.b16 %v309, %v308
        %v321 = vpack.c.b16 %v311, %v310
        %v322 = vpack.c.b16 %v313, %v312
        %v323 = vpack.c.b16 %v315, %v314
        %332 = vmatprep.subr.bf16.mxu0 0
        %333 = vmatpush1.bf16.msra.mxu0 %v323
        %334 = vmatprep.subr.bf16.mxu0 0
        %335 = vmatpush1.bf16.msra.mxu0 %v322
        %336 = vmatprep.subr.bf16.mxu0 0
        %337 = vmatpush1.bf16.msra.mxu0 %v321
        %338 = vmatprep.subr.bf16.mxu0 0
        %339 = vmatpush1.bf16.msra.mxu0 %v320
        %340 = vmatprep.subr.bf16.mxu0 0
        %341 = vmatpush1.bf16.msra.mxu0 %v319
        %342 = vmatprep.subr.bf16.mxu0 0
        %343 = vmatpush1.bf16.msra.mxu0 %v318
        %344 = vmatprep.subr.bf16.mxu0 0
        %345 = vmatpush1.bf16.msra.mxu0 %v317
        %346 = vmatprep.subr.bf16.mxu0 0
        %347 = vmatpush1.bf16.msra.mxu0 %v316
        %348 = vmatprep.subr.bf16.mxu0 0
        %349 = vmatpush2.bf16.msra.mxu0 0
        %350 = vmatprep.subr.bf16.mxu0 0
        %351 = vmatpush2.bf16.msra.mxu0 0
        %352 = vmatprep.subr.bf16.mxu0 0
        %353 = vmatpush2.bf16.msra.mxu0 0
        %354 = vmatprep.subr.bf16.mxu0 0
        %355 = vmatpush2.bf16.msra.mxu0 0
        %356 = vmatprep.subr.bf16.mxu0 0
        %357 = vmatpush2.bf16.msra.mxu0 0
        %358 = vmatprep.subr.bf16.mxu0 0
        %359 = vmatpush2.bf16.msra.mxu0 0
        %360 = vmatprep.subr.bf16.mxu0 0
        %361 = vmatpush2.bf16.msra.mxu0 0
        %362 = vmatprep.subr.bf16.mxu0 0
        %363 = vmatpush2.bf16.msra.mxu0 0
        %364 = vmatprep.mubr.bf16.mxu0 0
        %365 = vmatmul.mubr.bf16.gmra.mxu0 %v282
        %v366 = vpop.f32.mrf.mxu0
        %v367 = vadd.f32 0.0, %v366
        %v368 = vpop.f32.mrf.mxu0
        %v369 = vpop.f32.mrf.mxu0
        %v370 = vadd.f32 0.0, %v369
        %v371 = vpop.f32.mrf.mxu0
        %372 = vdwg.mxu0
        %v389 = vunpack.c.l.b16 %v243
        %v390 = vunpack.c.l.b16 %v244
        %v391 = vunpack.c.l.b16 %v245
        %v392 = vunpack.c.l.b16 %v246
        %v393 = vunpack.c.l.b16 %v247
        %v394 = vunpack.c.l.b16 %v248
        %v395 = vunpack.c.l.b16 %v249
        %v396 = vunpack.c.l.b16 %v250
        %v397 = vunpack.c.l.b16 %v251
        %v398 = vunpack.c.l.b16 %v252
        %v399 = vunpack.c.l.b16 %v253
        %v400 = vunpack.c.l.b16 %v254
        %v401 = vunpack.c.l.b16 %v255
        %v402 = vunpack.c.l.b16 %v256
        %v403 = vunpack.c.l.b16 %v257
        %v404 = vunpack.c.l.b16 %v258
        %v405 = vpack.c.b16 %v390, %v389
        %v406 = vpack.c.b16 %v392, %v391
        %v407 = vpack.c.b16 %v394, %v393
        %v408 = vpack.c.b16 %v396, %v395
        %v409 = vpack.c.b16 %v398, %v397
        %v410 = vpack.c.b16 %v400, %v399
        %v411 = vpack.c.b16 %v402, %v401
        %v412 = vpack.c.b16 %v404, %v403
        %421 = vmatprep.subr.bf16.mxu0 0
        %422 = vmatpush1.bf16.msra.mxu0 %v412
        %423 = vmatprep.subr.bf16.mxu0 0
        %424 = vmatpush1.bf16.msra.mxu0 %v411
        %425 = vmatprep.subr.bf16.mxu0 0
        %426 = vmatpush1.bf16.msra.mxu0 %v410
        %427 = vmatprep.subr.bf16.mxu0 0
        %428 = vmatpush1.bf16.msra.mxu0 %v409
        %429 = vmatprep.subr.bf16.mxu0 0
        %430 = vmatpush1.bf16.msra.mxu0 %v408
        %431 = vmatprep.subr.bf16.mxu0 0
        %432 = vmatpush1.bf16.msra.mxu0 %v407
        %433 = vmatprep.subr.bf16.mxu0 0
        %434 = vmatpush1.bf16.msra.mxu0 %v406
        %435 = vmatprep.subr.bf16.mxu0 0
        %436 = vmatpush1.bf16.msra.mxu0 %v405
        %437 = vmatprep.subr.bf16.mxu0 0
        %438 = vmatpush2.bf16.msra.mxu0 0
        %439 = vmatprep.subr.bf16.mxu0 0
        %440 = vmatpush2.bf16.msra.mxu0 0
        %441 = vmatprep.subr.bf16.mxu0 0
        %442 = vmatpush2.bf16.msra.mxu0 0
        %443 = vmatprep.subr.bf16.mxu0 0
        %444 = vmatpush2.bf16.msra.mxu0 0
        %445 = vmatprep.subr.bf16.mxu0 0
        %446 = vmatpush2.bf16.msra.mxu0 0
        %447 = vmatprep.subr.bf16.mxu0 0
        %448 = vmatpush2.bf16.msra.mxu0 0
        %449 = vmatprep.subr.bf16.mxu0 0
        %450 = vmatpush2.bf16.msra.mxu0 0
        %451 = vmatprep.subr.bf16.mxu0 0
        %452 = vmatpush2.bf16.msra.mxu0 0
        %453 = vmatprep.mubr.bf16.mxu0 0
        %454 = vmatmul.mubr.bf16.gmra.mxu0 %v242
        %v455 = vpop.f32.mrf.mxu0
        %v456 = vadd.f32 %v367, %v455
        %v457 = vpop.f32.mrf.mxu0
        %v458 = vpop.f32.mrf.mxu0
        %v459 = vadd.f32 %v370, %v458
        %v460 = vpop.f32.mrf.mxu0
        %461 = vdwg.mxu0
        %s462 = scalar_lea.vmem %s1, 128
        %v463 = vld [vmem:[%s462] sm:$0xf]
        %v464 = vld [vmem:[%s462 + $0x4] sm:$0xf]
        %v465 = vld [vmem:[%s462 + $0x8] sm:$0xf]
        %v466 = vld [vmem:[%s462 + $0xc] sm:$0xf]
        %v467 = vld [vmem:[%s462 + $0x10] sm:$0xf]
        %v468 = vld [vmem:[%s462 + $0x14] sm:$0xf]
        %v469 = vld [vmem:[%s462 + $0x18] sm:$0xf]
        %v470 = vld [vmem:[%s462 + $0x1c] sm:$0xf]
        %v471 = vld [vmem:[%s462 + $0x20] sm:$0xf]
        %v472 = vld [vmem:[%s462 + $0x24] sm:$0xf]
        %v473 = vld [vmem:[%s462 + $0x28] sm:$0xf]
        %v474 = vld [vmem:[%s462 + $0x2c] sm:$0xf]
        %v475 = vld [vmem:[%s462 + $0x30] sm:$0xf]
        %v476 = vld [vmem:[%s462 + $0x34] sm:$0xf]
        %v477 = vld [vmem:[%s462 + $0x38] sm:$0xf]
        %v478 = vld [vmem:[%s462 + $0x3c] sm:$0xf]
        %v480 = vrot.slane %v242, 1
        %v498 = vunpack.c.l.b16 %v463
        %v499 = vunpack.c.l.b16 %v464
        %v500 = vunpack.c.l.b16 %v465
        %v501 = vunpack.c.l.b16 %v466
        %v502 = vunpack.c.l.b16 %v467
        %v503 = vunpack.c.l.b16 %v468
        %v504 = vunpack.c.l.b16 %v469
        %v505 = vunpack.c.l.b16 %v470
        %v506 = vunpack.c.l.b16 %v471
        %v507 = vunpack.c.l.b16 %v472
        %v508 = vunpack.c.l.b16 %v473
        %v509 = vunpack.c.l.b16 %v474
        %v510 = vunpack.c.l.b16 %v475
        %v511 = vunpack.c.l.b16 %v476
        %v512 = vunpack.c.l.b16 %v477
        %v513 = vunpack.c.l.b16 %v478
        %v514 = vpack.c.b16 %v499, %v498
        %v515 = vpack.c.b16 %v501, %v500
        %v516 = vpack.c.b16 %v503, %v502
        %v517 = vpack.c.b16 %v505, %v504
        %v518 = vpack.c.b16 %v507, %v506
        %v519 = vpack.c.b16 %v509, %v508
        %v520 = vpack.c.b16 %v511, %v510
        %v521 = vpack.c.b16 %v513, %v512
        %530 = vmatprep.subr.bf16.mxu0 0
        %531 = vmatpush1.bf16.msra.mxu0 %v521
        %532 = vmatprep.subr.bf16.mxu0 0
        %533 = vmatpush1.bf16.msra.mxu0 %v520
        %534 = vmatprep.subr.bf16.mxu0 0
        %535 = vmatpush1.bf16.msra.mxu0 %v519
        %536 = vmatprep.subr.bf16.mxu0 0
        %537 = vmatpush1.bf16.msra.mxu0 %v518
        %538 = vmatprep.subr.bf16.mxu0 0
        %539 = vmatpush1.bf16.msra.mxu0 %v517
        %540 = vmatprep.subr.bf16.mxu0 0
        %541 = vmatpush1.bf16.msra.mxu0 %v516
        %542 = vmatprep.subr.bf16.mxu0 0
        %543 = vmatpush1.bf16.msra.mxu0 %v515
        %544 = vmatprep.subr.bf16.mxu0 0
        %545 = vmatpush1.bf16.msra.mxu0 %v514
        %546 = vmatprep.subr.bf16.mxu0 0
        %547 = vmatpush2.bf16.msra.mxu0 0
        %548 = vmatprep.subr.bf16.mxu0 0
        %549 = vmatpush2.bf16.msra.mxu0 0
        %550 = vmatprep.subr.bf16.mxu0 0
        %551 = vmatpush2.bf16.msra.mxu0 0
        %552 = vmatprep.subr.bf16.mxu0 0
        %553 = vmatpush2.bf16.msra.mxu0 0
        %554 = vmatprep.subr.bf16.mxu0 0
        %555 = vmatpush2.bf16.msra.mxu0 0
        %556 = vmatprep.subr.bf16.mxu0 0
        %557 = vmatpush2.bf16.msra.mxu0 0
        %558 = vmatprep.subr.bf16.mxu0 0
        %559 = vmatpush2.bf16.msra.mxu0 0
        %560 = vmatprep.subr.bf16.mxu0 0
        %561 = vmatpush2.bf16.msra.mxu0 0
        %562 = vmatprep.mubr.bf16.mxu0 0
        %563 = vmatmul.mubr.bf16.gmra.mxu0 %v480
        %v564 = vpop.f32.mrf.mxu0
        %v565 = vadd.f32 0.0, %v564
        %v566 = vpop.f32.mrf.mxu0
        %v567 = vpop.f32.mrf.mxu0
        %v568 = vadd.f32 0.0, %v567
        %v569 = vpop.f32.mrf.mxu0
        %570 = vdwg.mxu0
        %v571 = vadd.f32 %v456, %v565
        %v572 = vadd.f32 %v459, %v568
        %v573 = vld [vmem:[%s2] sm:$0x1]
        %v575 = vlaneseq
        %v576 = vshrl.u32 %v575, 7
        %v577 = vsub.s32 0, %v576
        %v578 = vrot.slane %v573, %v577
        %v580 = vadd.f32 %v571, %v578
        %v581 = vadd.f32 %v572, %v578
        %v582 = vxor.u32 %v580, 2147483648
        %v583 = vxor.u32 %v581, 2147483648
        %v584 = vmul.f32 %v582, 1.442695
        %v585 = vpow.pop %v584
        %v586 = vmul.f32 %v583, 1.442695
        %v587 = vpow.pop %v586
        %v588 = vadd.f32 %v585, 1.0
        %v589 = vadd.f32 %v587, 1.0
        %v590 = vrcp.pop %v588
        %v591 = vmul.f32 1.0, %v590
        %v592 = vrcp.pop %v589
        %v593 = vmul.f32 1.0, %v592
        %v594 = vmul.f32 %v580, %v591
        %v595 = vmul.f32 %v581, %v593
        %v596 = vlaneseq
        %v597 = vshrl.u32 %v596, 7
        %v598 = vadd.s32 %v597, 8
        %s599 = ssub.s32 %s238, 1
        %v600 = vstv %s599
        %v601 = vadd.s32 %v597, %v600
        %v602 = vadd.s32 %v598, %v600
        %vm603 = vcmp.ge.s32.totalorder %v601, 0
        %vm604 = vcmp.ge.s32.totalorder %v602, 0
        %vm605 = vcmp.lt.s32.totalorder %v601, 16
        %vm606 = vcmp.lt.s32.totalorder %v602, 16
        %vm607 = vmand %vm603, %vm605
        %vm608 = vmand %vm604, %vm606
        %v609 = vsel %vm607, 1.0, 0.0
        %v610 = vsel %vm608, 1.0, 0.0
        %v611 = vmul.f32 %v594, %v609
        %v612 = vmul.f32 %v595, %v610
        %v613 = vpack.c.bf16 %v612, %v611
        %v614 = vld [vmem:[%s3] sm:$0xf]
        %v615 = vld [vmem:[%s3 + $0x4] sm:$0xf]
        %v616 = vld [vmem:[%s3 + $0x8] sm:$0xf]
        %v617 = vld [vmem:[%s3 + $0xc] sm:$0xf]
        %v618 = vld [vmem:[%s3 + $0x10] sm:$0xf]
        %v619 = vld [vmem:[%s3 + $0x14] sm:$0xf]
        %v620 = vld [vmem:[%s3 + $0x18] sm:$0xf]
        %v621 = vld [vmem:[%s3 + $0x1c] sm:$0xf]
        %s622 = scalar_lea.vmem %s3, 32
        %v623 = vld [vmem:[%s622] sm:$0xf]
        %v624 = vld [vmem:[%s622 + $0x4] sm:$0xf]
        %v625 = vld [vmem:[%s622 + $0x8] sm:$0xf]
        %v626 = vld [vmem:[%s622 + $0xc] sm:$0xf]
        %v627 = vld [vmem:[%s622 + $0x10] sm:$0xf]
        %v628 = vld [vmem:[%s622 + $0x14] sm:$0xf]
        %v629 = vld [vmem:[%s622 + $0x18] sm:$0xf]
        %v630 = vld [vmem:[%s622 + $0x1c] sm:$0xf]
        %v632 = vshrl.u32 %v613, 16
        %v634 = vshll.u32 %v613, 16
        %v636 = vrot.slane %v634, 1
        %v637 = vor.u32 %v632, %v636
        %v646 = vunpack.c.l.b16 %v623
        %v647 = vunpack.c.l.b16 %v624
        %v648 = vunpack.c.l.b16 %v625
        %v649 = vunpack.c.l.b16 %v626
        %v650 = vunpack.c.l.b16 %v627
        %v651 = vunpack.c.l.b16 %v628
        %v652 = vunpack.c.l.b16 %v629
        %v653 = vunpack.c.l.b16 %v630
        %v654 = vpack.c.b16 %v647, %v646
        %v655 = vpack.c.b16 %v649, %v648
        %v656 = vpack.c.b16 %v651, %v650
        %v657 = vpack.c.b16 %v653, %v652
        %vm662 = vcmask 523264
        %v664 = vsel %vm662, %v637, 0
        %666 = vmatprep.subr.bf16.mxu0 0
        %667 = vmatpush1.bf16.msra.mxu0 0
        %668 = vmatprep.subr.bf16.mxu0 0
        %669 = vmatpush1.bf16.msra.mxu0 0
        %670 = vmatprep.subr.bf16.mxu0 0
        %671 = vmatpush1.bf16.msra.mxu0 0
        %672 = vmatprep.subr.bf16.mxu0 0
        %673 = vmatpush1.bf16.msra.mxu0 0
        %674 = vmatprep.subr.bf16.mxu0 0
        %675 = vmatpush1.bf16.msra.mxu0 %v657
        %676 = vmatprep.subr.bf16.mxu0 0
        %677 = vmatpush1.bf16.msra.mxu0 %v656
        %678 = vmatprep.subr.bf16.mxu0 0
        %679 = vmatpush1.bf16.msra.mxu0 %v655
        %680 = vmatprep.subr.bf16.mxu0 0
        %681 = vmatpush1.bf16.msra.mxu0 %v654
        %682 = vmatprep.subr.bf16.mxu0 0
        %683 = vmatpush2.bf16.msra.mxu0 0
        %684 = vmatprep.subr.bf16.mxu0 0
        %685 = vmatpush2.bf16.msra.mxu0 0
        %686 = vmatprep.subr.bf16.mxu0 0
        %687 = vmatpush2.bf16.msra.mxu0 0
        %688 = vmatprep.subr.bf16.mxu0 0
        %689 = vmatpush2.bf16.msra.mxu0 0
        %690 = vmatprep.subr.bf16.mxu0 0
        %691 = vmatpush2.bf16.msra.mxu0 0
        %692 = vmatprep.subr.bf16.mxu0 0
        %693 = vmatpush2.bf16.msra.mxu0 0
        %694 = vmatprep.subr.bf16.mxu0 0
        %695 = vmatpush2.bf16.msra.mxu0 0
        %696 = vmatprep.subr.bf16.mxu0 0
        %697 = vmatpush2.bf16.msra.mxu0 0
        %698 = vmatprep.mubr.bf16.mxu0 0
        %699 = vmatmul.mubr.bf16.gmra.mxu0 %v664
        %v700 = vpop.f32.mrf.mxu0
        %v701 = vadd.f32 0.0, %v700
        %v702 = vpop.f32.mrf.mxu0
        %v703 = vpop.f32.mrf.mxu0
        %v704 = vpop.f32.mrf.mxu0
        %705 = vdwg.mxu0
        %v714 = vunpack.c.l.b16 %v614
        %v715 = vunpack.c.l.b16 %v615
        %v716 = vunpack.c.l.b16 %v616
        %v717 = vunpack.c.l.b16 %v617
        %v718 = vunpack.c.l.b16 %v618
        %v719 = vunpack.c.l.b16 %v619
        %v720 = vunpack.c.l.b16 %v620
        %v721 = vunpack.c.l.b16 %v621
        %v722 = vpack.c.b16 %v715, %v714
        %v723 = vpack.c.b16 %v717, %v716
        %v724 = vpack.c.b16 %v719, %v718
        %v725 = vpack.c.b16 %v721, %v720
        %v730 = vsel %vm662, %v613, 0
        %732 = vmatprep.subr.bf16.mxu0 0
        %733 = vmatpush1.bf16.msra.mxu0 0
        %734 = vmatprep.subr.bf16.mxu0 0
        %735 = vmatpush1.bf16.msra.mxu0 0
        %736 = vmatprep.subr.bf16.mxu0 0
        %737 = vmatpush1.bf16.msra.mxu0 0
        %738 = vmatprep.subr.bf16.mxu0 0
        %739 = vmatpush1.bf16.msra.mxu0 0
        %740 = vmatprep.subr.bf16.mxu0 0
        %741 = vmatpush1.bf16.msra.mxu0 %v725
        %742 = vmatprep.subr.bf16.mxu0 0
        %743 = vmatpush1.bf16.msra.mxu0 %v724
        %744 = vmatprep.subr.bf16.mxu0 0
        %745 = vmatpush1.bf16.msra.mxu0 %v723
        %746 = vmatprep.subr.bf16.mxu0 0
        %747 = vmatpush1.bf16.msra.mxu0 %v722
        %748 = vmatprep.subr.bf16.mxu0 0
        %749 = vmatpush2.bf16.msra.mxu0 0
        %750 = vmatprep.subr.bf16.mxu0 0
        %751 = vmatpush2.bf16.msra.mxu0 0
        %752 = vmatprep.subr.bf16.mxu0 0
        %753 = vmatpush2.bf16.msra.mxu0 0
        %754 = vmatprep.subr.bf16.mxu0 0
        %755 = vmatpush2.bf16.msra.mxu0 0
        %756 = vmatprep.subr.bf16.mxu0 0
        %757 = vmatpush2.bf16.msra.mxu0 0
        %758 = vmatprep.subr.bf16.mxu0 0
        %759 = vmatpush2.bf16.msra.mxu0 0
        %760 = vmatprep.subr.bf16.mxu0 0
        %761 = vmatpush2.bf16.msra.mxu0 0
        %762 = vmatprep.subr.bf16.mxu0 0
        %763 = vmatpush2.bf16.msra.mxu0 0
        %764 = vmatprep.mubr.bf16.mxu0 0
        %765 = vmatmul.mubr.bf16.gmra.mxu0 %v730
        %v766 = vpop.f32.mrf.mxu0
        %v767 = vadd.f32 %v701, %v766
        %v768 = vpop.f32.mrf.mxu0
        %v769 = vpop.f32.mrf.mxu0
        %v770 = vpop.f32.mrf.mxu0
        %771 = vdwg.mxu0
        %s772 = scalar_lea.vmem %s3, 64
        %v773 = vld [vmem:[%s772] sm:$0xf]
        %v774 = vld [vmem:[%s772 + $0x4] sm:$0xf]
        %v775 = vld [vmem:[%s772 + $0x8] sm:$0xf]
        %v776 = vld [vmem:[%s772 + $0xc] sm:$0xf]
        %v777 = vld [vmem:[%s772 + $0x10] sm:$0xf]
        %v778 = vld [vmem:[%s772 + $0x14] sm:$0xf]
        %v779 = vld [vmem:[%s772 + $0x18] sm:$0xf]
        %v780 = vld [vmem:[%s772 + $0x1c] sm:$0xf]
        %v782 = vrot.slane %v613, 1
        %v791 = vunpack.c.l.b16 %v773
        %v792 = vunpack.c.l.b16 %v774
        %v793 = vunpack.c.l.b16 %v775
        %v794 = vunpack.c.l.b16 %v776
        %v795 = vunpack.c.l.b16 %v777
        %v796 = vunpack.c.l.b16 %v778
        %v797 = vunpack.c.l.b16 %v779
        %v798 = vunpack.c.l.b16 %v780
        %v799 = vpack.c.b16 %v792, %v791
        %v800 = vpack.c.b16 %v794, %v793
        %v801 = vpack.c.b16 %v796, %v795
        %v802 = vpack.c.b16 %v798, %v797
        %v808 = vsel %vm662, %v782, 0
        %810 = vmatprep.subr.bf16.mxu0 0
        %811 = vmatpush1.bf16.msra.mxu0 0
        %812 = vmatprep.subr.bf16.mxu0 0
        %813 = vmatpush1.bf16.msra.mxu0 0
        %814 = vmatprep.subr.bf16.mxu0 0
        %815 = vmatpush1.bf16.msra.mxu0 0
        %816 = vmatprep.subr.bf16.mxu0 0
        %817 = vmatpush1.bf16.msra.mxu0 0
        %818 = vmatprep.subr.bf16.mxu0 0
        %819 = vmatpush1.bf16.msra.mxu0 %v802
        %820 = vmatprep.subr.bf16.mxu0 0
        %821 = vmatpush1.bf16.msra.mxu0 %v801
        %822 = vmatprep.subr.bf16.mxu0 0
        %823 = vmatpush1.bf16.msra.mxu0 %v800
        %824 = vmatprep.subr.bf16.mxu0 0
        %825 = vmatpush1.bf16.msra.mxu0 %v799
        %826 = vmatprep.subr.bf16.mxu0 0
        %827 = vmatpush2.bf16.msra.mxu0 0
        %828 = vmatprep.subr.bf16.mxu0 0
        %829 = vmatpush2.bf16.msra.mxu0 0
        %830 = vmatprep.subr.bf16.mxu0 0
        %831 = vmatpush2.bf16.msra.mxu0 0
        %832 = vmatprep.subr.bf16.mxu0 0
        %833 = vmatpush2.bf16.msra.mxu0 0
        %834 = vmatprep.subr.bf16.mxu0 0
        %835 = vmatpush2.bf16.msra.mxu0 0
        %836 = vmatprep.subr.bf16.mxu0 0
        %837 = vmatpush2.bf16.msra.mxu0 0
        %838 = vmatprep.subr.bf16.mxu0 0
        %839 = vmatpush2.bf16.msra.mxu0 0
        %840 = vmatprep.subr.bf16.mxu0 0
        %841 = vmatpush2.bf16.msra.mxu0 0
        %842 = vmatprep.mubr.bf16.mxu0 0
        %843 = vmatmul.mubr.bf16.gmra.mxu0 %v808
        %v844 = vpop.f32.mrf.mxu0
        %v845 = vadd.f32 0.0, %v844
        %v846 = vpop.f32.mrf.mxu0
        %v847 = vpop.f32.mrf.mxu0
        %v848 = vpop.f32.mrf.mxu0
        %849 = vdwg.mxu0
        %v850 = vadd.f32 %v767, %v845
        %v851 = vld [vmem:[%s4] sm:$0x1]
        %v853 = vlaneseq
        %v854 = vshrl.u32 %v853, 7
        %v855 = vsub.s32 0, %v854
        %v856 = vrot.slane %v851, %v855
        %v858 = vadd.f32 %v850, %v856
        %v859 = vxor.u32 %v858, 2147483648
        %v860 = vmul.f32 %v859, 1.442695
        %v861 = vpow.pop %v860
        %v862 = vadd.f32 %v861, 1.0
        %v863 = vrcp.pop %v862
        %v864 = vmul.f32 1.0, %v863
        %v865 = vmul.f32 %v858, %v864
        %vm868 = vcmask 1045504
        %v869 = vrot.slane %v240, 2
        %v870 = vrot.slane %v241, 2
        %v871 = vsel %vm868, %v869, %v870
        %v873 = vadd.f32 %v865, %v871
        %874 = vst [vmem:[%s231] sm:$0xff] %v873
        %s875 = sand.u32 %s151, 1
        %s876 = scalar_lea.sflag [#allocation3], %s875
        %s877 = sand.u32 %s151, 1
        %s878 = smul.addr %s877, 8
        %s879 = scalar_lea.vmem [#allocation2], %s878
        // Predicated region
        $region41: #{tpu_custom_call.1} parent=39 // pred_check
          %p880 = pneg %p161
        $region42: #{tpu_custom_call.1} parent=39 // pred_check_branch
          %882 = sbr.rel (%p880) target = $region44
        $region43: #{tpu_custom_call.1} parent=39 // pred_region
          %s884 = ssub.s32 128, 128
          %885 = vsyncadd %s876, %s884
          %s886 = smul.addr %s23, 2
          %s887 = sadd.s32 %s24, %s886
          %s888 = smul.addr %s887, 128
          %s889 = scalar_lea.hbm %s5, %s888
          %s891 = sshll.u32 %s879, 4
          %s892 = int_to_ptr.vmem [resolvable:$true] %s891
          %894 = dma.vmem_to_hbm [thread:$0]  %s892, 128, %s889, %s876
        $region44: #{tpu_custom_call.1} parent=39 // pred_fallthru
          _
      $region40: #{tpu_custom_call.1} parent=5 // pred_fallthru
        _
      %p895 = scmp.le.s32.totalorder 2, %s14
      // Predicated region
      $region45: #{tpu_custom_call.1} parent=5 // pred_check
        %p896 = pneg %p895
      $region46: #{tpu_custom_call.1} parent=5 // pred_check_branch
        %898 = sbr.rel (%p896) target = $region48
      $region47: #{tpu_custom_call.1} parent=5 // pred_region
        %s899 = ssub.s32 %s14, 2
        // Predicated region
        $region49: #{tpu_custom_call.1} parent=47 // pred_check
          %p900 = pneg %p167
        $region50: #{tpu_custom_call.1} parent=47 // pred_check_branch
          %902 = sbr.rel (%p900) target = $region52
        $region51: #{tpu_custom_call.1} parent=47 // pred_region
          %s903 = sand.u32 %s152, 1
          %s904 = scalar_lea.sflag [#allocation3], %s903
          %s905 = sand.u32 %s152, 1
          %s906 = smul.addr %s905, 8
          %s907 = scalar_lea.vmem [#allocation2], %s906
          %908 = dma.done %s904, 128
        $region52: #{tpu_custom_call.1} parent=47 // pred_fallthru
          _
      $region48: #{tpu_custom_call.1} parent=5 // pred_fallthru
        _
    $region6: #{tpu_custom_call.1} parent=1 // loop_footer
      %s18 = sadd.s32 1, %s14
    $region7: #{tpu_custom_call.1} parent=1 // loop_footer_branch
      %13 = sbr.rel target = $region3
    $region8: #{tpu_custom_call.1} parent=1 // loop_exit
      _
    %909 = vsyncpa [#allocation3], 1
    %s910 = scalar_lea.sflag [#allocation3], 1
    %911 = vsyncpa %s910, 1

</llo_original>
